<compile_context>
chip_gen: v7x
topology: tpu7x:2x2x1
jax: 0.10.0
libtpu: 0.0.40
codegen_flags: <defaults>
</compile_context>

<pallas_src>
import numpy as np
import jax
import jax.numpy as jnp
from jax import lax
from jax.experimental import pallas as pl
from jax.experimental.pallas import tpu as pltpu


# ----------------------------------------------------------------------------
# Fused kernel: gather PE rows, then out = SiLU(x @ W1 + b1) @ W2 + b2 as [1,B,D]
# ----------------------------------------------------------------------------
def time_embed_kernel(ts_ref, pe_ref, w_ref, bias_ref, o_ref):
    B = ts_ref.shape[0]
    L, D = pe_ref.shape

    # ---- fused gather: pe[timesteps] via one-hot matmul (MXU, no dynamic slices)
    ts = ts_ref[...]                                        # [B, 1] int32
    pos = lax.broadcasted_iota(jnp.int32, (B, L), 1)        # [B, L]
    onehot = (pos == ts).astype(jnp.float32)                # [B, L]
    x = jnp.dot(onehot, pe_ref[...],
                preferred_element_type=jnp.float32)         # [B, D]

    # ---- MLP: SiLU(x @ W1 + b1) @ W2 + b2
    h = jnp.dot(x, w_ref[0], preferred_element_type=jnp.float32) + bias_ref[0:1, :]
    h = h * jax.nn.sigmoid(h)                               # SiLU (EUP sigmoid, f32)
    o = jnp.dot(h, w_ref[1], preferred_element_type=jnp.float32) + bias_ref[1:2, :]

    # ---- permute(1, 0, 2) of [B, 1, D]  ==  write [1, B, D] directly
    o_ref[0] = o.astype(o_ref.dtype)


def timestep_embedder_forward(timesteps, pe, w, bias):
    """timesteps: [B] int; pe: [L, 1, D]; w: [2, D, D] ([in,out]); bias: [2, D]."""
    L, _, D = pe.shape
    B = timesteps.shape[0]
    ts = timesteps.astype(jnp.int32).reshape(B, 1)          # [B, 1] for in-kernel one-hot
    pe2d = pe.reshape(L, D)                                 # flattened PE table

    cost = pl.CostEstimate(
        flops=2 * B * L * D + 4 * B * D * D + 4 * B * D,
        transcendentals=B * D,
        bytes_accessed=4 * (B + L * D + 2 * D * D + 2 * D + B * D),
    )

    return pl.pallas_call(
        time_embed_kernel,
        out_shape=jax.ShapeDtypeStruct((1, B, D), jnp.float32),
        in_specs=[
            pl.BlockSpec(memory_space=pltpu.MemorySpace.VMEM),   # timesteps [B,1] i32
            pl.BlockSpec(memory_space=pltpu.MemorySpace.VMEM),   # PE table  [L,D]
            pl.BlockSpec(memory_space=pltpu.MemorySpace.VMEM),   # weights   [2,D,D]
            pl.BlockSpec(memory_space=pltpu.MemorySpace.VMEM),   # biases    [2,D]
        ],
        out_specs=pl.BlockSpec(memory_space=pltpu.MemorySpace.VMEM),
        cost_estimate=cost,
    )(ts, pe2d, w, bias)


# ----------------------------------------------------------------------------
# PE table + pure-JAX reference
# ----------------------------------------------------------------------------
def make_sinusoidal_pe(max_len, d_model):
    """Standard PositionalEncoding table, shape [max_len, 1, d_model]."""
    position = np.arange(max_len, dtype=np.float32)[:, None]            # [L, 1]
    div_term = np.exp(np.arange(0, d_model, 2, dtype=np.float32)
                      * (-np.log(10000.0) / d_model))                    # [D/2]
    pe = np.zeros((max_len, d_model), dtype=np.float32)
    pe[:, 0::2] = np.sin(position * div_term)
    pe[:, 1::2] = np.cos(position * div_term)
    return jnp.asarray(pe[:, None, :])                                   # [L, 1, D]


def reference_forward(timesteps, pe, w, bias):
    emb = pe[timesteps]                                                  # [B, 1, D]
    h = jnp.einsum("bnd,de->bne", emb, w[0]) + bias[0][None, None, :]
    h = h * jax.nn.sigmoid(h)
    o = jnp.einsum("bnd,de->bne", h, w[1]) + bias[1][None, None, :]
    return o.transpose(1, 0, 2)                                          # [1, B, D]


if __name__ == "__main__":
    latent_dim = 32
    max_len = 64
    batch = 8

    key = jax.random.PRNGKey(0)
    k1, k2, k3, k4, k5 = jax.random.split(key, 5)

    # Deterministic synthetic parameters (nn.Linear(D, D) x2), stored as [in, out].
    scale = 1.0 / np.sqrt(latent_dim)
    w1 = jax.random.uniform(k1, (latent_dim, latent_dim), jnp.float32, -scale, scale)
    b1 = jax.random.uniform(k2, (latent_dim,), jnp.float32, -scale, scale)
    w2 = jax.random.uniform(k3, (latent_dim, latent_dim), jnp.float32, -scale, scale)
    b2 = jax.random.uniform(k4, (latent_dim,), jnp.float32, -scale, scale)
    w = jnp.stack([w1, w2], axis=0)          # [2, D, D]  (one DMA instead of two)
    bias = jnp.stack([b1, b2], axis=0)       # [2, D]     (one DMA instead of two)

    pe = make_sinusoidal_pe(max_len, latent_dim)                 # [L, 1, D]
    timesteps = jax.random.randint(k5, (batch,), 0, max_len)     # [B]

    out = jax.block_until_ready(timestep_embedder_forward(timesteps, pe, w, bias))
    ref = reference_forward(timesteps, pe, w, bias)

    assert out.shape == (1, batch, latent_dim), out.shape
    np.testing.assert_allclose(np.asarray(out), np.asarray(ref),
                               rtol=1e-5, atol=1e-5)
    print("KERNEL_OK")
</pallas_src>

<mosaic_0001>
module attributes {stable_mosaic.version = 11 : i64} {
  func.func @time_embed_kernel(%arg0: memref<8x1xi32, #tpu.memory_space<vmem>>, %arg1: memref<64x32xf32, #tpu.memory_space<vmem>>, %arg2: memref<2x32x32xf32, #tpu.memory_space<vmem>>, %arg3: memref<2x32xf32, #tpu.memory_space<vmem>>, %arg4: memref<1x8x32xf32, #tpu.memory_space<vmem>>) attributes {dimension_semantics = [], scalar_prefetch = 0 : i64, scratch_operands = 0 : i64, tpu.core_type = #tpu.core_type<tc>} {
    %c0 = arith.constant 0 : index
    %c0_0 = arith.constant 0 : index
    %0 = vector.load %arg0[%c0, %c0_0] : memref<8x1xi32, #tpu.memory_space<vmem>>, vector<8x1xi32>
    %1 = tpu.iota {dimensions = array<i32: 1>} : vector<8x64xi32>
    %2 = vector.broadcast %0 : vector<8x1xi32> to vector<8x64xi32>
    %3 = arith.cmpi eq, %1, %2 : vector<8x64xi32>
    %4 = arith.extui %3 : vector<8x64xi1> to vector<8x64xi32>
    %5 = arith.sitofp %4 : vector<8x64xi32> to vector<8x64xf32>
    %c0_1 = arith.constant 0 : index
    %c0_2 = arith.constant 0 : index
    %6 = vector.load %arg1[%c0_1, %c0_2] : memref<64x32xf32, #tpu.memory_space<vmem>>, vector<64x32xf32>
    %cst = arith.constant dense<0.000000e+00> : vector<8x32xf32>
    %7 = tpu.matmul %5, %6, %cst {dimension_numbers = #tpu.dot_dimension_numbers<[1], [0], [0], [1], [0, 0, 1, 1], [], []>} : vector<8x64xf32>, vector<64x32xf32>, vector<8x32xf32> -> vector<8x32xf32>
    %c0_3 = arith.constant 0 : index
    %c0_4 = arith.constant 0 : index
    %c0_5 = arith.constant 0 : index
    %8 = vector.load %arg2[%c0_3, %c0_4, %c0_5] : memref<2x32x32xf32, #tpu.memory_space<vmem>>, vector<1x32x32xf32>
    %9 = vector.shape_cast %8 : vector<1x32x32xf32> to vector<32x32xf32>
    %cst_6 = arith.constant dense<0.000000e+00> : vector<8x32xf32>
    %10 = tpu.matmul %7, %9, %cst_6 {dimension_numbers = #tpu.dot_dimension_numbers<[1], [0], [0], [1], [0, 0, 1, 1], [], []>} : vector<8x32xf32>, vector<32x32xf32>, vector<8x32xf32> -> vector<8x32xf32>
    %c0_7 = arith.constant 0 : index
    %c0_8 = arith.constant 0 : index
    %11 = vector.load %arg3[%c0_7, %c0_8] : memref<2x32xf32, #tpu.memory_space<vmem>>, vector<1x32xf32>
    %12 = vector.broadcast %11 : vector<1x32xf32> to vector<8x32xf32>
    %13 = arith.addf %10, %12 : vector<8x32xf32>
    %14 = arith.negf %13 : vector<8x32xf32>
    %15 = math.exp %14 : vector<8x32xf32>
    %cst_9 = arith.constant 1.000000e+00 : f32
    %16 = vector.broadcast %cst_9 : f32 to vector<8x32xf32>
    %17 = arith.addf %16, %15 : vector<8x32xf32>
    %18 = arith.divf %16, %17 : vector<8x32xf32>
    %19 = arith.mulf %13, %18 : vector<8x32xf32>
    %c1 = arith.constant 1 : index
    %c0_10 = arith.constant 0 : index
    %c0_11 = arith.constant 0 : index
    %20 = vector.load %arg2[%c1, %c0_10, %c0_11] : memref<2x32x32xf32, #tpu.memory_space<vmem>>, vector<1x32x32xf32>
    %21 = vector.shape_cast %20 : vector<1x32x32xf32> to vector<32x32xf32>
    %cst_12 = arith.constant dense<0.000000e+00> : vector<8x32xf32>
    %22 = tpu.matmul %19, %21, %cst_12 {dimension_numbers = #tpu.dot_dimension_numbers<[1], [0], [0], [1], [0, 0, 1, 1], [], []>} : vector<8x32xf32>, vector<32x32xf32>, vector<8x32xf32> -> vector<8x32xf32>
    %c1_13 = arith.constant 1 : index
    %c0_14 = arith.constant 0 : index
    %23 = vector.load %arg3[%c1_13, %c0_14] : memref<2x32xf32, #tpu.memory_space<vmem>>, vector<1x32xf32>
    %24 = vector.broadcast %23 : vector<1x32xf32> to vector<8x32xf32>
    %25 = arith.addf %22, %24 : vector<8x32xf32>
    %c0_15 = arith.constant 0 : index
    %c0_16 = arith.constant 0 : index
    %c0_17 = arith.constant 0 : index
    %26 = vector.load %arg4[%c0_15, %c0_16, %c0_17] : memref<1x8x32xf32, #tpu.memory_space<vmem>>, vector<1x8x32xf32>
    %27 = vector.shape_cast %26 : vector<1x8x32xf32> to vector<8x32xf32>
    %28 = vector.shape_cast %25 : vector<8x32xf32> to vector<1x8x32xf32>
    tpu.vector_store %arg4[%c0_15, %c0_16, %c0_17], %28 {strides = array<i32>} : memref<1x8x32xf32, #tpu.memory_space<vmem>>, vector<1x8x32xf32>,
    return
  }
}

</mosaic_0001>

<llo_original>
// kernel: tpu_custom_call.1
$region0: #{tpu_custom_call.1}
  #allocation0 [shape = 'u32[]', space=smem, size = 0x4, offset = 0x4, fixed_abs, tag = 'smem constant byte address 0x4 - core index']
  #allocation1 [shape = 'u32[144,128]{1,0:T(1,128)}', space=vmem, size = 0x12000, scoped, tag = 'internal scratch']
  %s0 = inlined_call_operand.vmem [shape: s32[8,1], index: 0, kind: input, shape index: {}]
  %s1 = inlined_call_operand.vmem [shape: f32[64,32], index: 1, kind: input, shape index: {}]
  %s2 = inlined_call_operand.vmem [shape: f32[2,32,32], index: 2, kind: input, shape index: {}]
  %s3 = inlined_call_operand.vmem [shape: f32[2,32], index: 3, kind: input, shape index: {}]
  %s4 = inlined_call_operand.hbm [shape: f32[1,8,32], index: 4, kind: output, shape index: {}]
  %s5 = sld [smem:[#allocation0]]
  $region26: #{tpu_custom_call.1} parent=0
    _
  %s7 = ssub.s32 1, %s5
  %s8 = scalar_select 0, %s7, %s5
  $region1: #{tpu_custom_call.1} parent=0
    #allocation2 [shape = 'u8[4096]{0}', space=vmem, size = 0x1000, scoped, tag = 'output window, operand 0, single buffered']
    #allocation3 [shape = 's32[1]{0}', space=sflag, size = 0x4, scoped, tag = 'scoped memory for tpu_custom_call.1']
    %9 = vsyncpa [#allocation3], 0
    // Predicated region
    $region2: #{tpu_custom_call.1} parent=1 // pred_check
      _
    $region3: #{tpu_custom_call.1} parent=1 // pred_check_branch
      %11 = sbr.rel (0) target = $region5
    $region4: #{tpu_custom_call.1} parent=1 // pred_region
      _
    $region5: #{tpu_custom_call.1} parent=1 // pred_fallthru
      _
    // Predicated region
    $region6: #{tpu_custom_call.1} parent=1 // pred_check
      _
    $region7: #{tpu_custom_call.1} parent=1 // pred_check_branch
      %13 = sbr.rel (0) target = $region9
    $region8: #{tpu_custom_call.1} parent=1 // pred_region
      _
    $region9: #{tpu_custom_call.1} parent=1 // pred_fallthru
      _
    // Predicated region
    $region10: #{tpu_custom_call.1} parent=1 // pred_check
      _
    $region11: #{tpu_custom_call.1} parent=1 // pred_check_branch
      %15 = sbr.rel (0) target = $region13
    $region12: #{tpu_custom_call.1} parent=1 // pred_region
      _
    $region13: #{tpu_custom_call.1} parent=1 // pred_fallthru
      _
    // Predicated region
    $region14: #{tpu_custom_call.1} parent=1 // pred_check
      _
    $region15: #{tpu_custom_call.1} parent=1 // pred_check_branch
      %17 = sbr.rel (0) target = $region17
    $region16: #{tpu_custom_call.1} parent=1 // pred_region
      _
    $region17: #{tpu_custom_call.1} parent=1 // pred_fallthru
      _
    %v18 = vld [vmem:[%s0] sm:$0xff]
    %v19 = vlaneseq
    %v20 = vand.u32 %v19, 127
    %21 = vset.pattern.permute.xlu0 0
    %22 = vperm.xlu0 %21, %v18
    %v23 = vpop.permute.xlu0 %22
    %vm24 = vcmp.eq.s32.totalorder %v20, %v23
    %v25 = vsel %vm24, 1, 0
    %v26 = vcvt.s32.f32 %v25
    %v27 = vld [vmem:[%s1] sm:$0xff]
    %v28 = vld [vmem:[%s1 + $0x8] sm:$0xff]
    %v29 = vld [vmem:[%s1 + $0x10] sm:$0xff]
    %v30 = vld [vmem:[%s1 + $0x18] sm:$0xff]
    %v31 = vld [vmem:[%s1 + $0x20] sm:$0xff]
    %v32 = vld [vmem:[%s1 + $0x28] sm:$0xff]
    %v33 = vld [vmem:[%s1 + $0x30] sm:$0xff]
    %v34 = vld [vmem:[%s1 + $0x38] sm:$0xff]
    %vm35 = vcmask 523264
    %v37 = vsel %vm35, %v26, 0
    %39 = vmatprep.subr.mxu0 0.0
    %40 = vmatpush1.msra.mxu0 %v27
    %41 = vmatprep.subr.mxu0 0.0
    %42 = vmatpush1.msra.mxu0 %v28
    %43 = vmatprep.subr.mxu0 0.0
    %44 = vmatpush1.msra.mxu0 %v29
    %45 = vmatprep.subr.mxu0 0.0
    %46 = vmatpush1.msra.mxu0 %v30
    %47 = vmatprep.subr.mxu0 0.0
    %48 = vmatpush1.msra.mxu0 %v31
    %49 = vmatprep.subr.mxu0 0.0
    %50 = vmatpush1.msra.mxu0 %v32
    %51 = vmatprep.subr.mxu0 0.0
    %52 = vmatpush1.msra.mxu0 %v33
    %53 = vmatprep.subr.mxu0 0.0
    %54 = vmatpush1.msra.mxu0 %v34
    %55 = vmatprep.subr.mxu0 0.0
    %56 = vmatpush1.msra.mxu0 0.0
    %57 = vmatprep.subr.mxu0 0.0
    %58 = vmatpush1.msra.mxu0 0.0
    %59 = vmatprep.subr.mxu0 0.0
    %60 = vmatpush1.msra.mxu0 0.0
    %61 = vmatprep.subr.mxu0 0.0
    %62 = vmatpush1.msra.mxu0 0.0
    %63 = vmatprep.subr.mxu0 0.0
    %64 = vmatpush1.msra.mxu0 0.0
    %65 = vmatprep.subr.mxu0 0.0
    %66 = vmatpush1.msra.mxu0 0.0
    %67 = vmatprep.subr.mxu0 0.0
    %68 = vmatpush1.msra.mxu0 0.0
    %69 = vmatprep.subr.mxu0 0.0
    %70 = vmatpush1.msra.mxu0 0.0
    %71 = vmatprep.subr.mxu0 0.0
    %72 = vmatpush1.msra.mxu0 0.0
    %73 = vmatprep.subr.mxu0 0.0
    %74 = vmatpush1.msra.mxu0 0.0
    %75 = vmatprep.subr.mxu0 0.0
    %76 = vmatpush1.msra.mxu0 0.0
    %77 = vmatprep.subr.mxu0 0.0
    %78 = vmatpush1.msra.mxu0 0.0
    %79 = vmatprep.subr.mxu0 0.0
    %80 = vmatpush1.msra.mxu0 0.0
    %81 = vmatprep.subr.mxu0 0.0
    %82 = vmatpush1.msra.mxu0 0.0
    %83 = vmatprep.subr.mxu0 0.0
    %84 = vmatpush1.msra.mxu0 0.0
    %85 = vmatprep.subr.mxu0 0.0
    %86 = vmatpush1.msra.mxu0 0.0
    %87 = vmatprep.subr.mxu0 0.0
    %88 = vmatpush1.msra.mxu0 0.0
    %89 = vmatprep.subr.mxu0 0.0
    %90 = vmatpush1.msra.mxu0 0.0
    %91 = vmatprep.subr.mxu0 0.0
    %92 = vmatpush1.msra.mxu0 0.0
    %93 = vmatprep.subr.mxu0 0.0
    %94 = vmatpush1.msra.mxu0 0.0
    %95 = vmatprep.subr.mxu0 0.0
    %96 = vmatpush1.msra.mxu0 0.0
    %97 = vmatprep.subr.mxu0 0.0
    %98 = vmatpush1.msra.mxu0 0.0
    %99 = vmatprep.subr.mxu0 0.0
    %100 = vmatpush1.msra.mxu0 0.0
    %101 = vmatprep.subr.mxu0 0.0
    %102 = vmatpush1.msra.mxu0 0.0
    %103 = vmatprep.mubr.f32.mxu0 0.0
    %104 = vmatmul.mubr.f32.gmra.mrb[0].mxu0 %v37
    %v105 = vpop.f32.mrb[0].mxu0
    %v106 = vadd.f32 0.0, %v105
    %v107 = vpop.f32.mrb[0].mxu0
    %108 = vdwg.mxu0
    %v109 = vld [vmem:[%s2] sm:$0xff]
    %v110 = vld [vmem:[%s2 + $0x8] sm:$0xff]
    %v111 = vld [vmem:[%s2 + $0x10] sm:$0xff]
    %v112 = vld [vmem:[%s2 + $0x18] sm:$0xff]
    %v113 = vld [vmem:[%s3] sm:$0x1]
    %v114 = vlaneseq
    %v115 = vshrl.u32 %v114, 7
    %v116 = vsub.s32 0, %v115
    %v117 = vrot.slane %v113, %v116
    %vm118 = vcmask 261120
    %v120 = vsel %vm118, %v106, 0
    %122 = vmatprep.subr.mxu0 0.0
    %123 = vmatpush1.msra.mxu0 %v109
    %124 = vmatprep.subr.mxu0 0.0
    %125 = vmatpush1.msra.mxu0 %v110
    %126 = vmatprep.subr.mxu0 0.0
    %127 = vmatpush1.msra.mxu0 %v111
    %128 = vmatprep.subr.mxu0 0.0
    %129 = vmatpush1.msra.mxu0 %v112
    %130 = vmatprep.subr.mxu0 0.0
    %131 = vmatpush1.msra.mxu0 0.0
    %132 = vmatprep.subr.mxu0 0.0
    %133 = vmatpush1.msra.mxu0 0.0
    %134 = vmatprep.subr.mxu0 0.0
    %135 = vmatpush1.msra.mxu0 0.0
    %136 = vmatprep.subr.mxu0 0.0
    %137 = vmatpush1.msra.mxu0 0.0
    %138 = vmatprep.subr.mxu0 0.0
    %139 = vmatpush1.msra.mxu0 0.0
    %140 = vmatprep.subr.mxu0 0.0
    %141 = vmatpush1.msra.mxu0 0.0
    %142 = vmatprep.subr.mxu0 0.0
    %143 = vmatpush1.msra.mxu0 0.0
    %144 = vmatprep.subr.mxu0 0.0
    %145 = vmatpush1.msra.mxu0 0.0
    %146 = vmatprep.subr.mxu0 0.0
    %147 = vmatpush1.msra.mxu0 0.0
    %148 = vmatprep.subr.mxu0 0.0
    %149 = vmatpush1.msra.mxu0 0.0
    %150 = vmatprep.subr.mxu0 0.0
    %151 = vmatpush1.msra.mxu0 0.0
    %152 = vmatprep.subr.mxu0 0.0
    %153 = vmatpush1.msra.mxu0 0.0
    %154 = vmatprep.subr.mxu0 0.0
    %155 = vmatpush1.msra.mxu0 0.0
    %156 = vmatprep.subr.mxu0 0.0
    %157 = vmatpush1.msra.mxu0 0.0
    %158 = vmatprep.subr.mxu0 0.0
    %159 = vmatpush1.msra.mxu0 0.0
    %160 = vmatprep.subr.mxu0 0.0
    %161 = vmatpush1.msra.mxu0 0.0
    %162 = vmatprep.subr.mxu0 0.0
    %163 = vmatpush1.msra.mxu0 0.0
    %164 = vmatprep.subr.mxu0 0.0
    %165 = vmatpush1.msra.mxu0 0.0
    %166 = vmatprep.subr.mxu0 0.0
    %167 = vmatpush1.msra.mxu0 0.0
    %168 = vmatprep.subr.mxu0 0.0
    %169 = vmatpush1.msra.mxu0 0.0
    %170 = vmatprep.subr.mxu0 0.0
    %171 = vmatpush1.msra.mxu0 0.0
    %172 = vmatprep.subr.mxu0 0.0
    %173 = vmatpush1.msra.mxu0 0.0
    %174 = vmatprep.subr.mxu0 0.0
    %175 = vmatpush1.msra.mxu0 0.0
    %176 = vmatprep.subr.mxu0 0.0
    %177 = vmatpush1.msra.mxu0 0.0
    %178 = vmatprep.subr.mxu0 0.0
    %179 = vmatpush1.msra.mxu0 0.0
    %180 = vmatprep.subr.mxu0 0.0
    %181 = vmatpush1.msra.mxu0 0.0
    %182 = vmatprep.subr.mxu0 0.0
    %183 = vmatpush1.msra.mxu0 0.0
    %184 = vmatprep.subr.mxu0 0.0
    %185 = vmatpush1.msra.mxu0 0.0
    %186 = vmatprep.mubr.f32.mxu0 0.0
    %187 = vmatmul.mubr.f32.gmra.mrb[0].mxu0 %v120
    %v188 = vpop.f32.mrb[0].mxu0
    %v189 = vadd.f32 %v117, %v188
    %v190 = vpop.f32.mrb[0].mxu0
    %191 = vdwg.mxu0
    %v192 = vxor.u32 %v189, 2147483648
    %v193 = vmul.f32 %v192, 1.442695
    %v194 = vpow.pop %v193
    %v195 = vadd.f32 %v194, 1.0
    %v196 = vrcp.pop %v195
    %v197 = vmul.f32 1.0, %v196
    %v198 = vmul.f32 %v189, %v197
    %s199 = scalar_lea.vmem %s2, 32
    %v200 = vld [vmem:[%s199] sm:$0xff]
    %v201 = vld [vmem:[%s199 + $0x8] sm:$0xff]
    %v202 = vld [vmem:[%s199 + $0x10] sm:$0xff]
    %v203 = vld [vmem:[%s199 + $0x18] sm:$0xff]
    %v204 = vld [vmem:[%s3 + $0x1] sm:$0x1]
    %v205 = vlaneseq
    %v206 = vshrl.u32 %v205, 7
    %v207 = vsub.s32 0, %v206
    %v208 = vrot.slane %v204, %v207
    %v210 = vsel %vm118, %v198, 0
    %212 = vmatprep.subr.mxu0 0.0
    %213 = vmatpush1.msra.mxu0 %v200
    %214 = vmatprep.subr.mxu0 0.0
    %215 = vmatpush1.msra.mxu0 %v201
    %216 = vmatprep.subr.mxu0 0.0
    %217 = vmatpush1.msra.mxu0 %v202
    %218 = vmatprep.subr.mxu0 0.0
    %219 = vmatpush1.msra.mxu0 %v203
    %220 = vmatprep.subr.mxu0 0.0
    %221 = vmatpush1.msra.mxu0 0.0
    %222 = vmatprep.subr.mxu0 0.0
    %223 = vmatpush1.msra.mxu0 0.0
    %224 = vmatprep.subr.mxu0 0.0
    %225 = vmatpush1.msra.mxu0 0.0
    %226 = vmatprep.subr.mxu0 0.0
    %227 = vmatpush1.msra.mxu0 0.0
    %228 = vmatprep.subr.mxu0 0.0
    %229 = vmatpush1.msra.mxu0 0.0
    %230 = vmatprep.subr.mxu0 0.0
    %231 = vmatpush1.msra.mxu0 0.0
    %232 = vmatprep.subr.mxu0 0.0
    %233 = vmatpush1.msra.mxu0 0.0
    %234 = vmatprep.subr.mxu0 0.0
    %235 = vmatpush1.msra.mxu0 0.0
    %236 = vmatprep.subr.mxu0 0.0
    %237 = vmatpush1.msra.mxu0 0.0
    %238 = vmatprep.subr.mxu0 0.0
    %239 = vmatpush1.msra.mxu0 0.0
    %240 = vmatprep.subr.mxu0 0.0
    %241 = vmatpush1.msra.mxu0 0.0
    %242 = vmatprep.subr.mxu0 0.0
    %243 = vmatpush1.msra.mxu0 0.0
    %244 = vmatprep.subr.mxu0 0.0
    %245 = vmatpush1.msra.mxu0 0.0
    %246 = vmatprep.subr.mxu0 0.0
    %247 = vmatpush1.msra.mxu0 0.0
    %248 = vmatprep.subr.mxu0 0.0
    %249 = vmatpush1.msra.mxu0 0.0
    %250 = vmatprep.subr.mxu0 0.0
    %251 = vmatpush1.msra.mxu0 0.0
    %252 = vmatprep.subr.mxu0 0.0
    %253 = vmatpush1.msra.mxu0 0.0
    %254 = vmatprep.subr.mxu0 0.0
    %255 = vmatpush1.msra.mxu0 0.0
    %256 = vmatprep.subr.mxu0 0.0
    %257 = vmatpush1.msra.mxu0 0.0
    %258 = vmatprep.subr.mxu0 0.0
    %259 = vmatpush1.msra.mxu0 0.0
    %260 = vmatprep.subr.mxu0 0.0
    %261 = vmatpush1.msra.mxu0 0.0
    %262 = vmatprep.subr.mxu0 0.0
    %263 = vmatpush1.msra.mxu0 0.0
    %264 = vmatprep.subr.mxu0 0.0
    %265 = vmatpush1.msra.mxu0 0.0
    %266 = vmatprep.subr.mxu0 0.0
    %267 = vmatpush1.msra.mxu0 0.0
    %268 = vmatprep.subr.mxu0 0.0
    %269 = vmatpush1.msra.mxu0 0.0
    %270 = vmatprep.subr.mxu0 0.0
    %271 = vmatpush1.msra.mxu0 0.0
    %272 = vmatprep.subr.mxu0 0.0
    %273 = vmatpush1.msra.mxu0 0.0
    %274 = vmatprep.subr.mxu0 0.0
    %275 = vmatpush1.msra.mxu0 0.0
    %276 = vmatprep.mubr.f32.mxu0 0.0
    %277 = vmatmul.mubr.f32.gmra.mrb[0].mxu0 %v210
    %v278 = vpop.f32.mrb[0].mxu0
    %v279 = vadd.f32 %v208, %v278
    %v280 = vpop.f32.mrb[0].mxu0
    %281 = vdwg.mxu0
    %282 = vst.msk [vmem:[#allocation2] sm:$0xff] %vm118, %v279
    // Predicated region
    $region18: #{tpu_custom_call.1} parent=1 // pred_check
      _
    $region19: #{tpu_custom_call.1} parent=1 // pred_check_branch
      %284 = sbr.rel (0) target = $region21
    $region20: #{tpu_custom_call.1} parent=1 // pred_region
      %s286 = ssub.s32 128, 128
      %287 = vsyncadd [#allocation3], %s286
      %s289 = sshll.u32 [#allocation2], 4
      %s290 = int_to_ptr.vmem [resolvable:$true] %s289
      %292 = dma.vmem_to_hbm [thread:$0]  %s290, 128, %s4, [#allocation3]
    $region21: #{tpu_custom_call.1} parent=1 // pred_fallthru
      _
    // Predicated region
    $region22: #{tpu_custom_call.1} parent=1 // pred_check
      _
    $region23: #{tpu_custom_call.1} parent=1 // pred_check_branch
      %294 = sbr.rel (0) target = $region25
    $region24: #{tpu_custom_call.1} parent=1 // pred_region
      %295 = dma.done [#allocation3], 128
    $region25: #{tpu_custom_call.1} parent=1 // pred_fallthru
      _
    %296 = vsyncpa [#allocation3], 1

</llo_original>
